<compile_context>
chip_gen: v7x
topology: tpu7x:2x2x1
jax: 0.10.0
libtpu: 0.0.40
codegen_flags: <defaults>
</compile_context>

<pallas_src>
import jax
import jax.numpy as jnp
from jax.experimental import pallas as pl
from jax.experimental.pallas import tpu as pltpu

LANE = 128  # TPU lane width; hidden/output dims are padded to this.


def _mlp_kernel(x_ref, w1_ref, wrest_ref, b_ref, o_ref):
    """Fused 5-layer MLP on one batch tile.

    x_ref:     [tile_b, in_dim]  bf16
    w1_ref:    [in_dim, 128]     bf16
    wrest_ref: [4, 128, 128]     bf16   (W2..W5, zero-padded to 128x128)
    b_ref:     [5, 128]          f32    (b1..b5, zero-padded to 128 lanes)
    o_ref:     [tile_b, 128]     f32    (lane-dense; real out_dim sliced outside)
    """
    # Layer 1 (+ReLU): bf16 operands straight into the MXU, f32 accumulate.
    h = jnp.dot(x_ref[...], w1_ref[...], preferred_element_type=jnp.float32)
    h = jnp.maximum(h + b_ref[0:1, :], 0.0).astype(jnp.bfloat16)

    # Layers 2-4 (+ReLU). Static Python loop -> fully unrolled at trace time.
    for i in range(3):
        h = jnp.dot(h, wrest_ref[i], preferred_element_type=jnp.float32)
        h = jnp.maximum(h + b_ref[i + 1:i + 2, :], 0.0).astype(jnp.bfloat16)

    # Layer 5 (no ReLU).
    h = jnp.dot(h, wrest_ref[3], preferred_element_type=jnp.float32)
    o_ref[...] = (h + b_ref[4:5, :]).astype(o_ref.dtype)


def _pad_axis(a, axis, target):
    pad = [(0, 0)] * a.ndim
    pad[axis] = (0, target - a.shape[axis])
    return jnp.pad(a, pad)


def _pack_params(params):
    """params: list of 5 (W [in, out], b [out]) f32 arrays.

    Returns (w1 [in_dim,128] bf16, wrest [4,128,128] bf16, biases [5,128] f32).
    """
    (w1, b1) = params[0]
    assert w1.shape[1] == LANE  # first hidden layer is 128 wide by construction
    w1 = w1.astype(jnp.bfloat16)

    wrest = []
    biases = [_pad_axis(b1.reshape(1, -1), 1, LANE)]
    for (w, b) in params[1:]:
        assert w.shape[0] <= LANE and w.shape[1] <= LANE
        wp = _pad_axis(_pad_axis(w, 0, LANE), 1, LANE)
        wrest.append(wp.astype(jnp.bfloat16))
        biases.append(_pad_axis(b.reshape(1, -1), 1, LANE))
    wrest = jnp.stack(wrest, axis=0)                               # [4, 128, 128]
    biases = jnp.concatenate(biases, axis=0).astype(jnp.float32)   # [5, 128]
    return w1, wrest, biases


def _pick_tile_b(B):
    # Start from 512 (sweep 256/512/1024 per generation) and halve until there
    # are at least 2 grid steps, so the pipeline double-buffers x and v7x can
    # shard the parallel batch axis across both TensorCores. Floor at 8 sublanes.
    tile = 512
    while tile > 8 and 2 * tile > B:
        tile //= 2
    return max(tile, 8)


def four_layer_mlp(x, params, *, tile_b=None):
    """x: [B, in_dim] float. params: list of 5 (W [in, out], b [out])."""
    B, in_dim = x.shape
    out_dim = params[-1][0].shape[1]
    assert out_dim <= LANE, "out_dim > 128 not supported by this packing"

    if tile_b is None:
        tile_b = _pick_tile_b(B)
    assert tile_b % 8 == 0

    # Pad batch to a multiple of tile_b (padded rows are discarded at the end).
    B_pad = ((B + tile_b - 1) // tile_b) * tile_b
    x_p = x if B_pad == B else jnp.pad(x, ((0, B_pad - B), (0, 0)))
    x_p = x_p.astype(jnp.bfloat16)  # bf16 operands; MXU accumulates in f32

    w1, wrest, biases = _pack_params(params)

    grid = (B_pad // tile_b,)

    # VMEM budget: double-buffered x/out tiles + (double-buffered) weight blobs.
    # Must fit comfortably on v7x's 64 MiB VMEM as well as v5e/v6e's 128 MiB.
    vmem_needed = (2 * (tile_b * in_dim * 2 + tile_b * LANE * 4)
                   + 2 * (w1.size * 2 + wrest.size * 2 + biases.size * 4))
    vmem_limit = 32 * 1024 * 1024
    assert vmem_needed < vmem_limit, f"tile_b={tile_b} too large for VMEM"

    out = pl.pallas_call(
        _mlp_kernel,
        out_shape=jax.ShapeDtypeStruct((B_pad, LANE), jnp.float32),
        grid_spec=pltpu.PrefetchScalarGridSpec(
            num_scalar_prefetch=0,
            grid=grid,
            in_specs=[
                pl.BlockSpec((tile_b, in_dim), lambda i: (i, 0)),
                # Grid-invariant weights: whole-array blocks with constant
                # index_map -> fetched once, VMEM-resident across grid steps.
                pl.BlockSpec(w1.shape, lambda i: (0, 0)),
                pl.BlockSpec(wrest.shape, lambda i: (0, 0, 0)),
                pl.BlockSpec(biases.shape, lambda i: (0, 0)),
            ],
            out_specs=pl.BlockSpec((tile_b, LANE), lambda i: (i, 0)),
        ),
        compiler_params=pltpu.CompilerParams(
            dimension_semantics=("parallel",),
            vmem_limit_bytes=vmem_limit,
        ),
    )(x_p, w1, wrest, biases)

    return out[:B, :out_dim]


def init_params(key, in_dim, out_dim):
    """PyTorch nn.Linear-style uniform init; weights stored as [in, out] (= W_torch.T)."""
    dims = [in_dim, 128, 64, 32, 16, out_dim]
    params = []
    for i in range(len(dims) - 1):
        fan_in, fan_out = dims[i], dims[i + 1]
        key, kw, kb = jax.random.split(key, 3)
        bound = 1.0 / jnp.sqrt(fan_in)
        w = jax.random.uniform(kw, (fan_in, fan_out), jnp.float32, -bound, bound)
        b = jax.random.uniform(kb, (fan_out,), jnp.float32, -bound, bound)
        params.append((w, b))
    return params


def reference_mlp(x, params):
    """Pure-JAX reference mimicking the kernel numerics (bf16 operands, f32 acc)."""
    h = x.astype(jnp.bfloat16)
    n = len(params)
    for i, (w, b) in enumerate(params):
        h = jnp.dot(h, w.astype(jnp.bfloat16), preferred_element_type=jnp.float32) + b
        if i < n - 1:
            h = jnp.maximum(h, 0.0).astype(jnp.bfloat16)
    return h


if __name__ == "__main__":
    key = jax.random.PRNGKey(0)
    in_dim, out_dim = 32, 8
    kx, kp, kx2 = jax.random.split(key, 3)
    params = init_params(kp, in_dim, out_dim)

    # Small shape (single-tile path).
    x_small = jax.random.normal(kx, (8, in_dim), jnp.float32)
    y_small = four_layer_mlp(x_small, params)
    jax.block_until_ready(y_small)
    assert y_small.shape == (8, out_dim)
    assert jnp.allclose(y_small, reference_mlp(x_small, params), atol=1e-3, rtol=1e-3)

    # Larger batch exercises the tiled/pipelined path (grid > 1, parallel axis).
    x_big = jax.random.normal(kx2, (1024, in_dim), jnp.float32)
    y_big = four_layer_mlp(x_big, params)
    jax.block_until_ready(y_big)
    assert y_big.shape == (1024, out_dim)
    assert jnp.allclose(y_big, reference_mlp(x_big, params), atol=1e-3, rtol=1e-3)

    print("KERNEL_OK")
</pallas_src>

<mosaic_0001>
module attributes {stable_mosaic.version = 11 : i64} {
  func.func @_mlp_kernel(%arg0: i32, %arg1: memref<8x32xbf16, #tpu.memory_space<vmem>>, %arg2: memref<32x128xbf16, #tpu.memory_space<vmem>>, %arg3: memref<4x128x128xbf16, #tpu.memory_space<vmem>>, %arg4: memref<5x128xf32, #tpu.memory_space<vmem>>, %arg5: memref<8x128xf32, #tpu.memory_space<vmem>>) attributes {dimension_semantics = [#tpu.dimension_semantics<parallel>], iteration_bounds = array<i64: 1>, scalar_prefetch = 0 : i64, scratch_operands = 0 : i64, tpu.core_type = #tpu.core_type<tc>, window_params = [{transform_indices = @transform_0, window_bounds = array<i64: 8, 32>}, {pipeline_mode = #tpu.pipeline_mode<synchronous>, transform_indices = @transform_1, window_bounds = array<i64: 32, 128>}, {pipeline_mode = #tpu.pipeline_mode<synchronous>, transform_indices = @transform_2, window_bounds = array<i64: 4, 128, 128>}, {pipeline_mode = #tpu.pipeline_mode<synchronous>, transform_indices = @transform_3, window_bounds = array<i64: 5, 128>}, {transform_indices = @transform_4, window_bounds = array<i64: 8, 128>}]} {
    %c0 = arith.constant 0 : index
    %c0_0 = arith.constant 0 : index
    %0 = vector.load %arg1[%c0, %c0_0] : memref<8x32xbf16, #tpu.memory_space<vmem>>, vector<8x32xbf16>
    %c0_1 = arith.constant 0 : index
    %c0_2 = arith.constant 0 : index
    %1 = vector.load %arg2[%c0_1, %c0_2] : memref<32x128xbf16, #tpu.memory_space<vmem>>, vector<32x128xbf16>
    %cst = arith.constant dense<0.000000e+00> : vector<8x128xf32>
    %2 = tpu.matmul %0, %1, %cst {dimension_numbers = #tpu.dot_dimension_numbers<[1], [0], [0], [1], [0, 0, 1, 1], [], []>} : vector<8x32xbf16>, vector<32x128xbf16>, vector<8x128xf32> -> vector<8x128xf32>
    %c0_3 = arith.constant 0 : index
    %c0_4 = arith.constant 0 : index
    %3 = vector.load %arg4[%c0_3, %c0_4] : memref<5x128xf32, #tpu.memory_space<vmem>>, vector<1x128xf32>
    %4 = vector.broadcast %3 : vector<1x128xf32> to vector<8x128xf32>
    %5 = arith.addf %2, %4 : vector<8x128xf32>
    %cst_5 = arith.constant 0.000000e+00 : f32
    %6 = vector.broadcast %cst_5 : f32 to vector<8x128xf32>
    %7 = arith.maximumf %5, %6 : vector<8x128xf32>
    %8 = arith.truncf %7 : vector<8x128xf32> to vector<8x128xbf16>
    %c0_6 = arith.constant 0 : index
    %c0_7 = arith.constant 0 : index
    %c0_8 = arith.constant 0 : index
    %9 = vector.load %arg3[%c0_6, %c0_7, %c0_8] : memref<4x128x128xbf16, #tpu.memory_space<vmem>>, vector<1x128x128xbf16>
    %10 = vector.shape_cast %9 : vector<1x128x128xbf16> to vector<128x128xbf16>
    %cst_9 = arith.constant dense<0.000000e+00> : vector<8x128xf32>
    %11 = tpu.matmul %8, %10, %cst_9 {dimension_numbers = #tpu.dot_dimension_numbers<[1], [0], [0], [1], [0, 0, 1, 1], [], []>} : vector<8x128xbf16>, vector<128x128xbf16>, vector<8x128xf32> -> vector<8x128xf32>
    %c1 = arith.constant 1 : index
    %c0_10 = arith.constant 0 : index
    %12 = vector.load %arg4[%c1, %c0_10] : memref<5x128xf32, #tpu.memory_space<vmem>>, vector<1x128xf32>
    %13 = vector.broadcast %12 : vector<1x128xf32> to vector<8x128xf32>
    %14 = arith.addf %11, %13 : vector<8x128xf32>
    %cst_11 = arith.constant 0.000000e+00 : f32
    %15 = vector.broadcast %cst_11 : f32 to vector<8x128xf32>
    %16 = arith.maximumf %14, %15 : vector<8x128xf32>
    %17 = arith.truncf %16 : vector<8x128xf32> to vector<8x128xbf16>
    %c1_12 = arith.constant 1 : index
    %c0_13 = arith.constant 0 : index
    %c0_14 = arith.constant 0 : index
    %18 = vector.load %arg3[%c1_12, %c0_13, %c0_14] : memref<4x128x128xbf16, #tpu.memory_space<vmem>>, vector<1x128x128xbf16>
    %19 = vector.shape_cast %18 : vector<1x128x128xbf16> to vector<128x128xbf16>
    %cst_15 = arith.constant dense<0.000000e+00> : vector<8x128xf32>
    %20 = tpu.matmul %17, %19, %cst_15 {dimension_numbers = #tpu.dot_dimension_numbers<[1], [0], [0], [1], [0, 0, 1, 1], [], []>} : vector<8x128xbf16>, vector<128x128xbf16>, vector<8x128xf32> -> vector<8x128xf32>
    %c2 = arith.constant 2 : index
    %c0_16 = arith.constant 0 : index
    %21 = vector.load %arg4[%c2, %c0_16] : memref<5x128xf32, #tpu.memory_space<vmem>>, vector<1x128xf32>
    %22 = vector.broadcast %21 : vector<1x128xf32> to vector<8x128xf32>
    %23 = arith.addf %20, %22 : vector<8x128xf32>
    %cst_17 = arith.constant 0.000000e+00 : f32
    %24 = vector.broadcast %cst_17 : f32 to vector<8x128xf32>
    %25 = arith.maximumf %23, %24 : vector<8x128xf32>
    %26 = arith.truncf %25 : vector<8x128xf32> to vector<8x128xbf16>
    %c2_18 = arith.constant 2 : index
    %c0_19 = arith.constant 0 : index
    %c0_20 = arith.constant 0 : index
    %27 = vector.load %arg3[%c2_18, %c0_19, %c0_20] : memref<4x128x128xbf16, #tpu.memory_space<vmem>>, vector<1x128x128xbf16>
    %28 = vector.shape_cast %27 : vector<1x128x128xbf16> to vector<128x128xbf16>
    %cst_21 = arith.constant dense<0.000000e+00> : vector<8x128xf32>
    %29 = tpu.matmul %26, %28, %cst_21 {dimension_numbers = #tpu.dot_dimension_numbers<[1], [0], [0], [1], [0, 0, 1, 1], [], []>} : vector<8x128xbf16>, vector<128x128xbf16>, vector<8x128xf32> -> vector<8x128xf32>
    %c3 = arith.constant 3 : index
    %c0_22 = arith.constant 0 : index
    %30 = vector.load %arg4[%c3, %c0_22] : memref<5x128xf32, #tpu.memory_space<vmem>>, vector<1x128xf32>
    %31 = vector.broadcast %30 : vector<1x128xf32> to vector<8x128xf32>
    %32 = arith.addf %29, %31 : vector<8x128xf32>
    %cst_23 = arith.constant 0.000000e+00 : f32
    %33 = vector.broadcast %cst_23 : f32 to vector<8x128xf32>
    %34 = arith.maximumf %32, %33 : vector<8x128xf32>
    %35 = arith.truncf %34 : vector<8x128xf32> to vector<8x128xbf16>
    %c3_24 = arith.constant 3 : index
    %c0_25 = arith.constant 0 : index
    %c0_26 = arith.constant 0 : index
    %36 = vector.load %arg3[%c3_24, %c0_25, %c0_26] : memref<4x128x128xbf16, #tpu.memory_space<vmem>>, vector<1x128x128xbf16>
    %37 = vector.shape_cast %36 : vector<1x128x128xbf16> to vector<128x128xbf16>
    %cst_27 = arith.constant dense<0.000000e+00> : vector<8x128xf32>
    %38 = tpu.matmul %35, %37, %cst_27 {dimension_numbers = #tpu.dot_dimension_numbers<[1], [0], [0], [1], [0, 0, 1, 1], [], []>} : vector<8x128xbf16>, vector<128x128xbf16>, vector<8x128xf32> -> vector<8x128xf32>
    %c4 = arith.constant 4 : index
    %c0_28 = arith.constant 0 : index
    %39 = vector.load %arg4[%c4, %c0_28] : memref<5x128xf32, #tpu.memory_space<vmem>>, vector<1x128xf32>
    %40 = vector.broadcast %39 : vector<1x128xf32> to vector<8x128xf32>
    %41 = arith.addf %38, %40 : vector<8x128xf32>
    %c0_29 = arith.constant 0 : index
    %c0_30 = arith.constant 0 : index
    %42 = vector.load %arg5[%c0_29, %c0_30] : memref<8x128xf32, #tpu.memory_space<vmem>>, vector<8x128xf32>
    tpu.vector_store %arg5[%c0_29, %c0_30], %41 {strides = array<i32>} : memref<8x128xf32, #tpu.memory_space<vmem>>, vector<8x128xf32>,
    return
  }
  func.func @transform_0(%arg0: i32) -> (i32, i32) {
    %c0_i32 = arith.constant 0 : i32
    %c0_i32_0 = arith.constant 0 : i32
    return %arg0, %c0_i32 : i32, i32
  }
  func.func @transform_1(%arg0: i32) -> (i32, i32) {
    %c0_i32 = arith.constant 0 : i32
    %c0_i32_0 = arith.constant 0 : i32
    %c0_i32_1 = arith.constant 0 : i32
    return %c0_i32, %c0_i32_0 : i32, i32
  }
  func.func @transform_2(%arg0: i32) -> (i32, i32, i32) {
    %c0_i32 = arith.constant 0 : i32
    %c0_i32_0 = arith.constant 0 : i32
    %c0_i32_1 = arith.constant 0 : i32
    %c0_i32_2 = arith.constant 0 : i32
    return %c0_i32, %c0_i32_0, %c0_i32_1 : i32, i32, i32
  }
  func.func @transform_3(%arg0: i32) -> (i32, i32) {
    %c0_i32 = arith.constant 0 : i32
    %c0_i32_0 = arith.constant 0 : i32
    %c0_i32_1 = arith.constant 0 : i32
    return %c0_i32, %c0_i32_0 : i32, i32
  }
  func.func @transform_4(%arg0: i32) -> (i32, i32) {
    %c0_i32 = arith.constant 0 : i32
    %c0_i32_0 = arith.constant 0 : i32
    return %arg0, %c0_i32 : i32, i32
  }
}

</mosaic_0001>

<llo_original>
// kernel: tpu_custom_call.1
$region0: #{tpu_custom_call.1}
  #allocation0 [shape = 'u32[]', space=smem, size = 0x4, offset = 0x4, fixed_abs, tag = 'smem constant byte address 0x4 - core index']
  #allocation1 [shape = 'u32[144,128]{1,0:T(1,128)}', space=vmem, size = 0x12000, scoped, tag = 'internal scratch']
  %s0 = inlined_call_operand.hbm [shape: bf16[8,32], index: 0, kind: input, shape index: {}]
  %s1 = inlined_call_operand.hbm [shape: bf16[32,128], index: 1, kind: input, shape index: {}]
  %s2 = inlined_call_operand.hbm [shape: bf16[4,128,128], index: 2, kind: input, shape index: {}]
  %s3 = inlined_call_operand.vmem [shape: f32[5,128], index: 3, kind: input, shape index: {}]
  %s4 = inlined_call_operand.hbm [shape: f32[8,128], index: 4, kind: output, shape index: {}]
  %s5 = sld [smem:[#allocation0]]
  $region38: #{tpu_custom_call.1} parent=0
    _
  %s7 = ssub.s32 1, %s5
  %s8 = scalar_select 0, %s7, %s5
  $region1: #{tpu_custom_call.1} parent=0
    #allocation2 [shape = 'u8[2048]{0}', space=vmem, size = 0x800, scoped, tag = 'input window, operand 0, single buffered']
    #allocation3 [shape = 's32[1]{0}', space=sflag, size = 0x4, scoped, tag = 'scoped memory for tpu_custom_call.1']
    #allocation4 [shape = 's32[1]{0}', space=sflag, size = 0x4, scoped, tag = 'scoped memory for tpu_custom_call.1']
    #allocation5 [shape = 'u8[8192]{0}', space=vmem, size = 0x2000, scoped, tag = 'input window, operand 1, single buffered']
    #allocation6 [shape = 's32[1]{0}', space=sflag, size = 0x4, scoped, tag = 'scoped memory for tpu_custom_call.1']
    #allocation7 [shape = 'u8[131072]{0}', space=vmem, size = 0x20000, scoped, tag = 'input window, operand 2, single buffered']
    #allocation8 [shape = 'u8[4096]{0}', space=vmem, size = 0x1000, scoped, tag = 'output window, operand 0, single buffered']
    %9 = vsyncpa [#allocation3], 0
    %10 = vsyncpa [#allocation6], 0
    %11 = vsyncpa [#allocation4], 0
    // Predicated region
    $region2: #{tpu_custom_call.1} parent=1 // pred_check
      _
    $region3: #{tpu_custom_call.1} parent=1 // pred_check_branch
      %13 = sbr.rel (0) target = $region5
    $region4: #{tpu_custom_call.1} parent=1 // pred_region
      %s15 = ssub.s32 64, 64
      %16 = vsyncadd [#allocation3], %s15
      %s18 = sshll.u32 [#allocation2], 4
      %s19 = int_to_ptr.vmem [resolvable:$true] %s18
      %21 = dma.hbm_to_vmem [thread:$0]  %s0, 64, %s19, [#allocation3]
    $region5: #{tpu_custom_call.1} parent=1 // pred_fallthru
      _
    // Predicated region
    $region6: #{tpu_custom_call.1} parent=1 // pred_check
      _
    $region7: #{tpu_custom_call.1} parent=1 // pred_check_branch
      %23 = sbr.rel (0) target = $region9
    $region8: #{tpu_custom_call.1} parent=1 // pred_region
      %s25 = ssub.s32 256, 256
      %26 = vsyncadd [#allocation6], %s25
      %s27 = sshll.u32 [#allocation5], 4
      %s28 = int_to_ptr.vmem [resolvable:$true] %s27
      %33 = dma.hbm_to_vmem [thread:$0]  %s1, 256, %s28, [#allocation6], 64, 64, 4
    $region9: #{tpu_custom_call.1} parent=1 // pred_fallthru
      _
    // Predicated region
    $region10: #{tpu_custom_call.1} parent=1 // pred_check
      _
    $region11: #{tpu_custom_call.1} parent=1 // pred_check_branch
      %35 = sbr.rel (0) target = $region13
    $region12: #{tpu_custom_call.1} parent=1 // pred_region
      %s37 = ssub.s32 4096, 4096
      %38 = vsyncadd [#allocation6], %s37
      %s39 = sshll.u32 [#allocation7], 4
      %s40 = int_to_ptr.vmem [resolvable:$true] %s39
      %45 = dma.hbm_to_vmem [thread:$0]  %s2, 4096, %s40, [#allocation6], 64, 64, 4
    $region13: #{tpu_custom_call.1} parent=1 // pred_fallthru
      _
    // Predicated region
    $region14: #{tpu_custom_call.1} parent=1 // pred_check
      _
    $region15: #{tpu_custom_call.1} parent=1 // pred_check_branch
      %47 = sbr.rel (0) target = $region17
    $region16: #{tpu_custom_call.1} parent=1 // pred_region
      _
    $region17: #{tpu_custom_call.1} parent=1 // pred_fallthru
      _
    // Predicated region
    $region18: #{tpu_custom_call.1} parent=1 // pred_check
      _
    $region19: #{tpu_custom_call.1} parent=1 // pred_check_branch
      %49 = sbr.rel (0) target = $region21
    $region20: #{tpu_custom_call.1} parent=1 // pred_region
      %50 = dma.done [#allocation3], 64
    $region21: #{tpu_custom_call.1} parent=1 // pred_fallthru
      _
    // Predicated region
    $region22: #{tpu_custom_call.1} parent=1 // pred_check
      _
    $region23: #{tpu_custom_call.1} parent=1 // pred_check_branch
      %52 = sbr.rel (0) target = $region25
    $region24: #{tpu_custom_call.1} parent=1 // pred_region
      %53 = dma.done [#allocation6], 256
    $region25: #{tpu_custom_call.1} parent=1 // pred_fallthru
      _
    // Predicated region
    $region26: #{tpu_custom_call.1} parent=1 // pred_check
      _
    $region27: #{tpu_custom_call.1} parent=1 // pred_check_branch
      %55 = sbr.rel (0) target = $region29
    $region28: #{tpu_custom_call.1} parent=1 // pred_region
      %56 = dma.done [#allocation6], 4096
    $region29: #{tpu_custom_call.1} parent=1 // pred_fallthru
      _
    %v58 = vld [vmem:[#allocation2] sm:$0xf]
    %v59 = vld [vmem:[#allocation5] sm:$0xf]
    %v60 = vld [vmem:[#allocation5 + $0x4] sm:$0xf]
    %v61 = vld [vmem:[#allocation5 + $0x8] sm:$0xf]
    %v62 = vld [vmem:[#allocation5 + $0xc] sm:$0xf]
    %v63 = vld [vmem:[%s3] sm:$0x1]
    %v64 = vlaneseq
    %v65 = vshrl.u32 %v64, 7
    %v66 = vsub.s32 0, %v65
    %v67 = vrot.slane %v63, %v66
    %v72 = vunpack.c.l.b16 %v59
    %v73 = vunpack.c.l.b16 %v60
    %v74 = vunpack.c.l.b16 %v61
    %v75 = vunpack.c.l.b16 %v62
    %v76 = vpack.c.b16 %v73, %v72
    %v77 = vpack.c.b16 %v75, %v74
    %vm80 = vcmask 261120
    %v82 = vsel %vm80, %v58, 0
    %84 = vmatprep.subr.bf16.mxu0 0
    %85 = vmatpush1.bf16.msra.mxu0 %v76
    %86 = vmatprep.subr.bf16.mxu0 0
    %87 = vmatpush1.bf16.msra.mxu0 %v77
    %88 = vmatprep.subr.bf16.mxu0 0
    %89 = vmatpush1.bf16.msra.mxu0 0
    %90 = vmatprep.subr.bf16.mxu0 0
    %91 = vmatpush1.bf16.msra.mxu0 0
    %92 = vmatprep.subr.bf16.mxu0 0
    %93 = vmatpush1.bf16.msra.mxu0 0
    %94 = vmatprep.subr.bf16.mxu0 0
    %95 = vmatpush1.bf16.msra.mxu0 0
    %96 = vmatprep.subr.bf16.mxu0 0
    %97 = vmatpush1.bf16.msra.mxu0 0
    %98 = vmatprep.subr.bf16.mxu0 0
    %99 = vmatpush1.bf16.msra.mxu0 0
    %100 = vmatprep.subr.bf16.mxu0 0
    %101 = vmatpush1.bf16.msra.mxu0 0
    %102 = vmatprep.subr.bf16.mxu0 0
    %103 = vmatpush1.bf16.msra.mxu0 0
    %104 = vmatprep.subr.bf16.mxu0 0
    %105 = vmatpush1.bf16.msra.mxu0 0
    %106 = vmatprep.subr.bf16.mxu0 0
    %107 = vmatpush1.bf16.msra.mxu0 0
    %108 = vmatprep.subr.bf16.mxu0 0
    %109 = vmatpush1.bf16.msra.mxu0 0
    %110 = vmatprep.subr.bf16.mxu0 0
    %111 = vmatpush1.bf16.msra.mxu0 0
    %112 = vmatprep.subr.bf16.mxu0 0
    %113 = vmatpush1.bf16.msra.mxu0 0
    %114 = vmatprep.subr.bf16.mxu0 0
    %115 = vmatpush1.bf16.msra.mxu0 0
    %116 = vmatprep.mubr.bf16.mxu0 0
    %117 = vmatmul.mubr.bf16.gmra.mrb[0].mxu0 %v82
    %v118 = vpop.f32.mrb[0].mxu0
    %v119 = vadd.f32 %v67, %v118
    %v120 = vpop.f32.mrb[0].mxu0
    %v121 = vpop.f32.mrb[0].mxu0
    %v122 = vpop.f32.mrb[0].mxu0
    %123 = vdwg.mxu0
    %v124 = vmax.f32 %v119, 0.0
    %v125 = vpack.c.bf16 %v124, %v124
    %v126 = vld [vmem:[#allocation7] sm:$0xf]
    %v127 = vld [vmem:[#allocation7 + $0x4] sm:$0xf]
    %v128 = vld [vmem:[#allocation7 + $0x8] sm:$0xf]
    %v129 = vld [vmem:[#allocation7 + $0xc] sm:$0xf]
    %v130 = vld [vmem:[#allocation7 + $0x10] sm:$0xf]
    %v131 = vld [vmem:[#allocation7 + $0x14] sm:$0xf]
    %v132 = vld [vmem:[#allocation7 + $0x18] sm:$0xf]
    %v133 = vld [vmem:[#allocation7 + $0x1c] sm:$0xf]
    %v134 = vld [vmem:[#allocation7 + $0x20] sm:$0xf]
    %v135 = vld [vmem:[#allocation7 + $0x24] sm:$0xf]
    %v136 = vld [vmem:[#allocation7 + $0x28] sm:$0xf]
    %v137 = vld [vmem:[#allocation7 + $0x2c] sm:$0xf]
    %v138 = vld [vmem:[#allocation7 + $0x30] sm:$0xf]
    %v139 = vld [vmem:[#allocation7 + $0x34] sm:$0xf]
    %v140 = vld [vmem:[#allocation7 + $0x38] sm:$0xf]
    %v141 = vld [vmem:[#allocation7 + $0x3c] sm:$0xf]
    %v142 = vld [vmem:[%s3 + $0x1] sm:$0x1]
    %v143 = vlaneseq
    %v144 = vshrl.u32 %v143, 7
    %v145 = vsub.s32 0, %v144
    %v146 = vrot.slane %v142, %v145
    %v163 = vunpack.c.l.b16 %v126
    %v164 = vunpack.c.l.b16 %v127
    %v165 = vunpack.c.l.b16 %v128
    %v166 = vunpack.c.l.b16 %v129
    %v167 = vunpack.c.l.b16 %v130
    %v168 = vunpack.c.l.b16 %v131
    %v169 = vunpack.c.l.b16 %v132
    %v170 = vunpack.c.l.b16 %v133
    %v171 = vunpack.c.l.b16 %v134
    %v172 = vunpack.c.l.b16 %v135
    %v173 = vunpack.c.l.b16 %v136
    %v174 = vunpack.c.l.b16 %v137
    %v175 = vunpack.c.l.b16 %v138
    %v176 = vunpack.c.l.b16 %v139
    %v177 = vunpack.c.l.b16 %v140
    %v178 = vunpack.c.l.b16 %v141
    %v179 = vpack.c.b16 %v164, %v163
    %v180 = vpack.c.b16 %v166, %v165
    %v181 = vpack.c.b16 %v168, %v167
    %v182 = vpack.c.b16 %v170, %v169
    %v183 = vpack.c.b16 %v172, %v171
    %v184 = vpack.c.b16 %v174, %v173
    %v185 = vpack.c.b16 %v176, %v175
    %v186 = vpack.c.b16 %v178, %v177
    %195 = vmatprep.subr.bf16.mxu0 0
    %196 = vmatpush1.bf16.msra.mxu0 %v179
    %197 = vmatprep.subr.bf16.mxu0 0
    %198 = vmatpush1.bf16.msra.mxu0 %v180
    %199 = vmatprep.subr.bf16.mxu0 0
    %200 = vmatpush1.bf16.msra.mxu0 %v181
    %201 = vmatprep.subr.bf16.mxu0 0
    %202 = vmatpush1.bf16.msra.mxu0 %v182
    %203 = vmatprep.subr.bf16.mxu0 0
    %204 = vmatpush1.bf16.msra.mxu0 %v183
    %205 = vmatprep.subr.bf16.mxu0 0
    %206 = vmatpush1.bf16.msra.mxu0 %v184
    %207 = vmatprep.subr.bf16.mxu0 0
    %208 = vmatpush1.bf16.msra.mxu0 %v185
    %209 = vmatprep.subr.bf16.mxu0 0
    %210 = vmatpush1.bf16.msra.mxu0 %v186
    %211 = vmatprep.subr.bf16.mxu0 0
    %212 = vmatpush1.bf16.msra.mxu0 0
    %213 = vmatprep.subr.bf16.mxu0 0
    %214 = vmatpush1.bf16.msra.mxu0 0
    %215 = vmatprep.subr.bf16.mxu0 0
    %216 = vmatpush1.bf16.msra.mxu0 0
    %217 = vmatprep.subr.bf16.mxu0 0
    %218 = vmatpush1.bf16.msra.mxu0 0
    %219 = vmatprep.subr.bf16.mxu0 0
    %220 = vmatpush1.bf16.msra.mxu0 0
    %221 = vmatprep.subr.bf16.mxu0 0
    %222 = vmatpush1.bf16.msra.mxu0 0
    %223 = vmatprep.subr.bf16.mxu0 0
    %224 = vmatpush1.bf16.msra.mxu0 0
    %225 = vmatprep.subr.bf16.mxu0 0
    %226 = vmatpush1.bf16.msra.mxu0 0
    %227 = vmatprep.mubr.bf16.mxu0 0
    %228 = vmatmul.mubr.bf16.gmra.mrb[0].mxu0 %v125
    %v229 = vpop.f32.mrb[0].mxu0
    %v230 = vadd.f32 %v146, %v229
    %v231 = vpop.f32.mrb[0].mxu0
    %v232 = vpop.f32.mrb[0].mxu0
    %v233 = vpop.f32.mrb[0].mxu0
    %234 = vdwg.mxu0
    %v235 = vmax.f32 %v230, 0.0
    %v236 = vpack.c.bf16 %v235, %v235
    %s237 = scalar_lea.vmem [#allocation7], 64
    %v238 = vld [vmem:[%s237] sm:$0xf]
    %v239 = vld [vmem:[%s237 + $0x4] sm:$0xf]
    %v240 = vld [vmem:[%s237 + $0x8] sm:$0xf]
    %v241 = vld [vmem:[%s237 + $0xc] sm:$0xf]
    %v242 = vld [vmem:[%s237 + $0x10] sm:$0xf]
    %v243 = vld [vmem:[%s237 + $0x14] sm:$0xf]
    %v244 = vld [vmem:[%s237 + $0x18] sm:$0xf]
    %v245 = vld [vmem:[%s237 + $0x1c] sm:$0xf]
    %v246 = vld [vmem:[%s237 + $0x20] sm:$0xf]
    %v247 = vld [vmem:[%s237 + $0x24] sm:$0xf]
    %v248 = vld [vmem:[%s237 + $0x28] sm:$0xf]
    %v249 = vld [vmem:[%s237 + $0x2c] sm:$0xf]
    %v250 = vld [vmem:[%s237 + $0x30] sm:$0xf]
    %v251 = vld [vmem:[%s237 + $0x34] sm:$0xf]
    %v252 = vld [vmem:[%s237 + $0x38] sm:$0xf]
    %v253 = vld [vmem:[%s237 + $0x3c] sm:$0xf]
    %v254 = vld [vmem:[%s3 + $0x2] sm:$0x1]
    %v255 = vlaneseq
    %v256 = vshrl.u32 %v255, 7
    %v257 = vsub.s32 0, %v256
    %v258 = vrot.slane %v254, %v257
    %v275 = vunpack.c.l.b16 %v238
    %v276 = vunpack.c.l.b16 %v239
    %v277 = vunpack.c.l.b16 %v240
    %v278 = vunpack.c.l.b16 %v241
    %v279 = vunpack.c.l.b16 %v242
    %v280 = vunpack.c.l.b16 %v243
    %v281 = vunpack.c.l.b16 %v244
    %v282 = vunpack.c.l.b16 %v245
    %v283 = vunpack.c.l.b16 %v246
    %v284 = vunpack.c.l.b16 %v247
    %v285 = vunpack.c.l.b16 %v248
    %v286 = vunpack.c.l.b16 %v249
    %v287 = vunpack.c.l.b16 %v250
    %v288 = vunpack.c.l.b16 %v251
    %v289 = vunpack.c.l.b16 %v252
    %v290 = vunpack.c.l.b16 %v253
    %v291 = vpack.c.b16 %v276, %v275
    %v292 = vpack.c.b16 %v278, %v277
    %v293 = vpack.c.b16 %v280, %v279
    %v294 = vpack.c.b16 %v282, %v281
    %v295 = vpack.c.b16 %v284, %v283
    %v296 = vpack.c.b16 %v286, %v285
    %v297 = vpack.c.b16 %v288, %v287
    %v298 = vpack.c.b16 %v290, %v289
    %307 = vmatprep.subr.bf16.mxu0 0
    %308 = vmatpush1.bf16.msra.mxu0 %v291
    %309 = vmatprep.subr.bf16.mxu0 0
    %310 = vmatpush1.bf16.msra.mxu0 %v292
    %311 = vmatprep.subr.bf16.mxu0 0
    %312 = vmatpush1.bf16.msra.mxu0 %v293
    %313 = vmatprep.subr.bf16.mxu0 0
    %314 = vmatpush1.bf16.msra.mxu0 %v294
    %315 = vmatprep.subr.bf16.mxu0 0
    %316 = vmatpush1.bf16.msra.mxu0 %v295
    %317 = vmatprep.subr.bf16.mxu0 0
    %318 = vmatpush1.bf16.msra.mxu0 %v296
    %319 = vmatprep.subr.bf16.mxu0 0
    %320 = vmatpush1.bf16.msra.mxu0 %v297
    %321 = vmatprep.subr.bf16.mxu0 0
    %322 = vmatpush1.bf16.msra.mxu0 %v298
    %323 = vmatprep.subr.bf16.mxu0 0
    %324 = vmatpush1.bf16.msra.mxu0 0
    %325 = vmatprep.subr.bf16.mxu0 0
    %326 = vmatpush1.bf16.msra.mxu0 0
    %327 = vmatprep.subr.bf16.mxu0 0
    %328 = vmatpush1.bf16.msra.mxu0 0
    %329 = vmatprep.subr.bf16.mxu0 0
    %330 = vmatpush1.bf16.msra.mxu0 0
    %331 = vmatprep.subr.bf16.mxu0 0
    %332 = vmatpush1.bf16.msra.mxu0 0
    %333 = vmatprep.subr.bf16.mxu0 0
    %334 = vmatpush1.bf16.msra.mxu0 0
    %335 = vmatprep.subr.bf16.mxu0 0
    %336 = vmatpush1.bf16.msra.mxu0 0
    %337 = vmatprep.subr.bf16.mxu0 0
    %338 = vmatpush1.bf16.msra.mxu0 0
    %339 = vmatprep.mubr.bf16.mxu0 0
    %340 = vmatmul.mubr.bf16.gmra.mrb[0].mxu0 %v236
    %v341 = vpop.f32.mrb[0].mxu0
    %v342 = vadd.f32 %v258, %v341
    %v343 = vpop.f32.mrb[0].mxu0
    %v344 = vpop.f32.mrb[0].mxu0
    %v345 = vpop.f32.mrb[0].mxu0
    %346 = vdwg.mxu0
    %v347 = vmax.f32 %v342, 0.0
    %v348 = vpack.c.bf16 %v347, %v347
    %s349 = scalar_lea.vmem [#allocation7], 128
    %v350 = vld [vmem:[%s349] sm:$0xf]
    %v351 = vld [vmem:[%s349 + $0x4] sm:$0xf]
    %v352 = vld [vmem:[%s349 + $0x8] sm:$0xf]
    %v353 = vld [vmem:[%s349 + $0xc] sm:$0xf]
    %v354 = vld [vmem:[%s349 + $0x10] sm:$0xf]
    %v355 = vld [vmem:[%s349 + $0x14] sm:$0xf]
    %v356 = vld [vmem:[%s349 + $0x18] sm:$0xf]
    %v357 = vld [vmem:[%s349 + $0x1c] sm:$0xf]
    %v358 = vld [vmem:[%s349 + $0x20] sm:$0xf]
    %v359 = vld [vmem:[%s349 + $0x24] sm:$0xf]
    %v360 = vld [vmem:[%s349 + $0x28] sm:$0xf]
    %v361 = vld [vmem:[%s349 + $0x2c] sm:$0xf]
    %v362 = vld [vmem:[%s349 + $0x30] sm:$0xf]
    %v363 = vld [vmem:[%s349 + $0x34] sm:$0xf]
    %v364 = vld [vmem:[%s349 + $0x38] sm:$0xf]
    %v365 = vld [vmem:[%s349 + $0x3c] sm:$0xf]
    %v366 = vld [vmem:[%s3 + $0x3] sm:$0x1]
    %v367 = vlaneseq
    %v368 = vshrl.u32 %v367, 7
    %v369 = vsub.s32 0, %v368
    %v370 = vrot.slane %v366, %v369
    %v387 = vunpack.c.l.b16 %v350
    %v388 = vunpack.c.l.b16 %v351
    %v389 = vunpack.c.l.b16 %v352
    %v390 = vunpack.c.l.b16 %v353
    %v391 = vunpack.c.l.b16 %v354
    %v392 = vunpack.c.l.b16 %v355
    %v393 = vunpack.c.l.b16 %v356
    %v394 = vunpack.c.l.b16 %v357
    %v395 = vunpack.c.l.b16 %v358
    %v396 = vunpack.c.l.b16 %v359
    %v397 = vunpack.c.l.b16 %v360
    %v398 = vunpack.c.l.b16 %v361
    %v399 = vunpack.c.l.b16 %v362
    %v400 = vunpack.c.l.b16 %v363
    %v401 = vunpack.c.l.b16 %v364
    %v402 = vunpack.c.l.b16 %v365
    %v403 = vpack.c.b16 %v388, %v387
    %v404 = vpack.c.b16 %v390, %v389
    %v405 = vpack.c.b16 %v392, %v391
    %v406 = vpack.c.b16 %v394, %v393
    %v407 = vpack.c.b16 %v396, %v395
    %v408 = vpack.c.b16 %v398, %v397
    %v409 = vpack.c.b16 %v400, %v399
    %v410 = vpack.c.b16 %v402, %v401
    %419 = vmatprep.subr.bf16.mxu0 0
    %420 = vmatpush1.bf16.msra.mxu0 %v403
    %421 = vmatprep.subr.bf16.mxu0 0
    %422 = vmatpush1.bf16.msra.mxu0 %v404
    %423 = vmatprep.subr.bf16.mxu0 0
    %424 = vmatpush1.bf16.msra.mxu0 %v405
    %425 = vmatprep.subr.bf16.mxu0 0
    %426 = vmatpush1.bf16.msra.mxu0 %v406
    %427 = vmatprep.subr.bf16.mxu0 0
    %428 = vmatpush1.bf16.msra.mxu0 %v407
    %429 = vmatprep.subr.bf16.mxu0 0
    %430 = vmatpush1.bf16.msra.mxu0 %v408
    %431 = vmatprep.subr.bf16.mxu0 0
    %432 = vmatpush1.bf16.msra.mxu0 %v409
    %433 = vmatprep.subr.bf16.mxu0 0
    %434 = vmatpush1.bf16.msra.mxu0 %v410
    %435 = vmatprep.subr.bf16.mxu0 0
    %436 = vmatpush1.bf16.msra.mxu0 0
    %437 = vmatprep.subr.bf16.mxu0 0
    %438 = vmatpush1.bf16.msra.mxu0 0
    %439 = vmatprep.subr.bf16.mxu0 0
    %440 = vmatpush1.bf16.msra.mxu0 0
    %441 = vmatprep.subr.bf16.mxu0 0
    %442 = vmatpush1.bf16.msra.mxu0 0
    %443 = vmatprep.subr.bf16.mxu0 0
    %444 = vmatpush1.bf16.msra.mxu0 0
    %445 = vmatprep.subr.bf16.mxu0 0
    %446 = vmatpush1.bf16.msra.mxu0 0
    %447 = vmatprep.subr.bf16.mxu0 0
    %448 = vmatpush1.bf16.msra.mxu0 0
    %449 = vmatprep.subr.bf16.mxu0 0
    %450 = vmatpush1.bf16.msra.mxu0 0
    %451 = vmatprep.mubr.bf16.mxu0 0
    %452 = vmatmul.mubr.bf16.gmra.mrb[0].mxu0 %v348
    %v453 = vpop.f32.mrb[0].mxu0
    %v454 = vadd.f32 %v370, %v453
    %v455 = vpop.f32.mrb[0].mxu0
    %v456 = vpop.f32.mrb[0].mxu0
    %v457 = vpop.f32.mrb[0].mxu0
    %458 = vdwg.mxu0
    %v459 = vmax.f32 %v454, 0.0
    %v460 = vpack.c.bf16 %v459, %v459
    %s461 = scalar_lea.vmem [#allocation7], 192
    %v462 = vld [vmem:[%s461] sm:$0xf]
    %v463 = vld [vmem:[%s461 + $0x4] sm:$0xf]
    %v464 = vld [vmem:[%s461 + $0x8] sm:$0xf]
    %v465 = vld [vmem:[%s461 + $0xc] sm:$0xf]
    %v466 = vld [vmem:[%s461 + $0x10] sm:$0xf]
    %v467 = vld [vmem:[%s461 + $0x14] sm:$0xf]
    %v468 = vld [vmem:[%s461 + $0x18] sm:$0xf]
    %v469 = vld [vmem:[%s461 + $0x1c] sm:$0xf]
    %v470 = vld [vmem:[%s461 + $0x20] sm:$0xf]
    %v471 = vld [vmem:[%s461 + $0x24] sm:$0xf]
    %v472 = vld [vmem:[%s461 + $0x28] sm:$0xf]
    %v473 = vld [vmem:[%s461 + $0x2c] sm:$0xf]
    %v474 = vld [vmem:[%s461 + $0x30] sm:$0xf]
    %v475 = vld [vmem:[%s461 + $0x34] sm:$0xf]
    %v476 = vld [vmem:[%s461 + $0x38] sm:$0xf]
    %v477 = vld [vmem:[%s461 + $0x3c] sm:$0xf]
    %v478 = vld [vmem:[%s3 + $0x4] sm:$0x1]
    %v479 = vlaneseq
    %v480 = vshrl.u32 %v479, 7
    %v481 = vsub.s32 0, %v480
    %v482 = vrot.slane %v478, %v481
    %v499 = vunpack.c.l.b16 %v462
    %v500 = vunpack.c.l.b16 %v463
    %v501 = vunpack.c.l.b16 %v464
    %v502 = vunpack.c.l.b16 %v465
    %v503 = vunpack.c.l.b16 %v466
    %v504 = vunpack.c.l.b16 %v467
    %v505 = vunpack.c.l.b16 %v468
    %v506 = vunpack.c.l.b16 %v469
    %v507 = vunpack.c.l.b16 %v470
    %v508 = vunpack.c.l.b16 %v471
    %v509 = vunpack.c.l.b16 %v472
    %v510 = vunpack.c.l.b16 %v473
    %v511 = vunpack.c.l.b16 %v474
    %v512 = vunpack.c.l.b16 %v475
    %v513 = vunpack.c.l.b16 %v476
    %v514 = vunpack.c.l.b16 %v477
    %v515 = vpack.c.b16 %v500, %v499
    %v516 = vpack.c.b16 %v502, %v501
    %v517 = vpack.c.b16 %v504, %v503
    %v518 = vpack.c.b16 %v506, %v505
    %v519 = vpack.c.b16 %v508, %v507
    %v520 = vpack.c.b16 %v510, %v509
    %v521 = vpack.c.b16 %v512, %v511
    %v522 = vpack.c.b16 %v514, %v513
    %531 = vmatprep.subr.bf16.mxu0 0
    %532 = vmatpush1.bf16.msra.mxu0 %v515
    %533 = vmatprep.subr.bf16.mxu0 0
    %534 = vmatpush1.bf16.msra.mxu0 %v516
    %535 = vmatprep.subr.bf16.mxu0 0
    %536 = vmatpush1.bf16.msra.mxu0 %v517
    %537 = vmatprep.subr.bf16.mxu0 0
    %538 = vmatpush1.bf16.msra.mxu0 %v518
    %539 = vmatprep.subr.bf16.mxu0 0
    %540 = vmatpush1.bf16.msra.mxu0 %v519
    %541 = vmatprep.subr.bf16.mxu0 0
    %542 = vmatpush1.bf16.msra.mxu0 %v520
    %543 = vmatprep.subr.bf16.mxu0 0
    %544 = vmatpush1.bf16.msra.mxu0 %v521
    %545 = vmatprep.subr.bf16.mxu0 0
    %546 = vmatpush1.bf16.msra.mxu0 %v522
    %547 = vmatprep.subr.bf16.mxu0 0
    %548 = vmatpush1.bf16.msra.mxu0 0
    %549 = vmatprep.subr.bf16.mxu0 0
    %550 = vmatpush1.bf16.msra.mxu0 0
    %551 = vmatprep.subr.bf16.mxu0 0
    %552 = vmatpush1.bf16.msra.mxu0 0
    %553 = vmatprep.subr.bf16.mxu0 0
    %554 = vmatpush1.bf16.msra.mxu0 0
    %555 = vmatprep.subr.bf16.mxu0 0
    %556 = vmatpush1.bf16.msra.mxu0 0
    %557 = vmatprep.subr.bf16.mxu0 0
    %558 = vmatpush1.bf16.msra.mxu0 0
    %559 = vmatprep.subr.bf16.mxu0 0
    %560 = vmatpush1.bf16.msra.mxu0 0
    %561 = vmatprep.subr.bf16.mxu0 0
    %562 = vmatpush1.bf16.msra.mxu0 0
    %563 = vmatprep.mubr.bf16.mxu0 0
    %564 = vmatmul.mubr.bf16.gmra.mrb[0].mxu0 %v460
    %v565 = vpop.f32.mrb[0].mxu0
    %v566 = vadd.f32 %v482, %v565
    %v567 = vpop.f32.mrb[0].mxu0
    %v568 = vpop.f32.mrb[0].mxu0
    %v569 = vpop.f32.mrb[0].mxu0
    %570 = vdwg.mxu0
    %571 = vst [vmem:[#allocation8] sm:$0xff] %v566
    // Predicated region
    $region30: #{tpu_custom_call.1} parent=1 // pred_check
      _
    $region31: #{tpu_custom_call.1} parent=1 // pred_check_branch
      %573 = sbr.rel (0) target = $region33
    $region32: #{tpu_custom_call.1} parent=1 // pred_region
      %s575 = ssub.s32 128, 128
      %576 = vsyncadd [#allocation4], %s575
      %s578 = sshll.u32 [#allocation8], 4
      %s579 = int_to_ptr.vmem [resolvable:$true] %s578
      %581 = dma.vmem_to_hbm [thread:$0]  %s579, 128, %s4, [#allocation4]
    $region33: #{tpu_custom_call.1} parent=1 // pred_fallthru
      _
    // Predicated region
    $region34: #{tpu_custom_call.1} parent=1 // pred_check
      _
    $region35: #{tpu_custom_call.1} parent=1 // pred_check_branch
      %583 = sbr.rel (0) target = $region37
    $region36: #{tpu_custom_call.1} parent=1 // pred_region
      %584 = dma.done [#allocation4], 128
    $region37: #{tpu_custom_call.1} parent=1 // pred_fallthru
      _
    %585 = vsyncpa [#allocation3], 1
    %586 = vsyncpa [#allocation6], 1
    %587 = vsyncpa [#allocation4], 1

</llo_original>
